<compile_context>
chip_gen: v7x
topology: tpu7x:2x2x1
jax: 0.10.0
libtpu: 0.0.40
codegen_flags: <defaults>
</compile_context>

<pallas_src>
import numpy as np

import jax
import jax.numpy as jnp
from jax.experimental import pallas as pl
from jax.experimental.pallas import tpu as pltpu

_LANE = 128
_BASE_SUBLANE = 8
_MIN_PALLAS_BYTES = 512 * 1024   # below this, fused XLA multiply wins (launch latency)


def _tile_budget():
    """(target_tile_bytes, vmem_limit_bytes), sized per TPU generation.

    v5e/v6e: 128 MiB VMEM per TC -> bigger tiles + higher scoped limit.
    v7x:      64 MiB VMEM per TC -> keep the double-buffered pipeline <= ~48 MiB.
    """
    try:
        vmem_cap = pltpu.get_tpu_info().vmem_capacity_bytes
    except Exception:
        vmem_cap = 0
    if vmem_cap >= 100 * 1024 * 1024:                    # v5e / v6e
        return 16 * 1024 * 1024, 80 * 1024 * 1024
    return 8 * 1024 * 1024, 48 * 1024 * 1024             # v7x or unknown


def _sublane_quantum(*dtypes):
    """Native packed-tile row quantum: 8 for 32-bit, 16 for 16-bit, 32 for 8-bit."""
    q = _BASE_SUBLANE
    for dt in dtypes:
        itemsize = jnp.dtype(dt).itemsize
        q = max(q, _BASE_SUBLANE * max(1, 4 // itemsize))
    return q


def _choose_slab(n, quantum):
    """Pick (rows, cols) with rows*cols == n, cols a large multiple of 128.

    Prefers rows % quantum == 0 (fully packed sublanes for the dtype);
    otherwise takes the most lane-dense factorization.  Requires n % 128 == 0.
    """
    assert n % _LANE == 0
    fallback = None
    for cols in (4096, 2048, 1024, 512, 256, 128):
        if n % cols == 0:
            rows = n // cols
            if rows % quantum == 0:
                return rows, cols
            if fallback is None:
                fallback = (rows, cols)
    return fallback


def _divisors(n):
    ds = set()
    i = 1
    while i * i <= n:
        if n % i == 0:
            ds.add(i)
            ds.add(n // i)
        i += 1
    return ds


def _choose_tile_rows(rows, cols, itemsize, quantum, tile_bytes):
    """Rows per block: quantum-aligned, ~tile_bytes per block, >=2 blocks when
    possible (so v7x's two TensorCores both stream), preferring an exact
    divisor of `rows` (uniform blocks -> unmasked stores, full-size DMAs)."""
    if rows <= quantum:
        return rows                                   # single full-extent block
    target = (tile_bytes // (cols * itemsize)) // quantum * quantum
    target = max(quantum, target)
    if rows >= 2 * quantum:                           # leave >=2 blocks for megacore
        half = (rows // 2) // quantum * quantum
        if half >= quantum:
            target = min(target, half)
    target = min(target, rows)
    best = None
    for d in _divisors(rows):
        if d % quantum == 0 and d <= target and (best is None or d > best):
            best = d
    if best is not None:
        return best
    # No quantum-aligned divisor: quantum-aligned tr with a masked last block.
    return max(quantum, (target // quantum) * quantum)


def _make_const_kernel(factor):
    def kernel(x_ref, o_ref):
        # factor is a trace-time constant; weak typing keeps x's float width.
        o_ref[...] = (x_ref[...] * factor).astype(o_ref.dtype)
    return kernel


def _smem_factor_kernel(f_ref, x_ref, o_ref):
    o_ref[...] = (x_ref[...] * f_ref[0]).astype(o_ref.dtype)


def multiply(x, factor, *, force_pallas: bool = False) -> jax.Array:
    """Elementwise x * factor (the Multiply module's forward) via Pallas on TPU."""
    x = jnp.asarray(x)
    orig_shape = x.shape
    out_dtype = jnp.result_type(x, factor)

    static_factor = isinstance(
        factor, (bool, int, float, np.bool_, np.integer, np.floating)
    )
    factor_arr = None
    if not static_factor:
        factor_arr = jnp.asarray(factor)
        if factor_arr.size != 1:
            # Broadcasting tensor factor: fused XLA multiply is already optimal.
            # TODO(synk): add a broadcast-aware Pallas path if non-scalar factors matter.
            return (x * factor).astype(out_dtype)

    # Tiny-field bypass: launch + pipeline prologue dominates below ~0.5 MiB.
    in_itemsize = jnp.dtype(x.dtype).itemsize
    if x.size == 0 or (not force_pallas and x.size * in_itemsize < _MIN_PALLAS_BYTES):
        return (x * factor).astype(out_dtype)

    flat = x.reshape(-1)
    n = flat.shape[0]

    # Ragged path: Pallas over the 128-aligned prefix, tiny tail via XLA
    # (no whole-array pad + slice round trip).
    n_main = (n // _LANE) * _LANE
    if n_main == 0:
        return (x * factor).astype(out_dtype)
    main = flat[:n_main] if n_main != n else flat

    quantum = _sublane_quantum(x.dtype, out_dtype)
    rows, cols = _choose_slab(n_main, quantum)
    x2 = main.reshape(rows, cols)

    out_itemsize = jnp.dtype(out_dtype).itemsize
    tile_bytes, vmem_limit = _tile_budget()
    tr = _choose_tile_rows(rows, cols, max(in_itemsize, out_itemsize), quantum, tile_bytes)

    cost = pl.CostEstimate(
        flops=n_main,
        transcendentals=0,
        bytes_accessed=n_main * (in_itemsize + out_itemsize),
    )
    compiler_params = pltpu.CompilerParams(
        dimension_semantics=("parallel",),
        vmem_limit_bytes=vmem_limit,
    )
    grid = (pl.cdiv(rows, tr),)
    x_spec = pl.BlockSpec((tr, cols), lambda i: (i, 0))
    o_spec = pl.BlockSpec((tr, cols), lambda i: (i, 0))
    out_shape = jax.ShapeDtypeStruct((rows, cols), out_dtype)

    if static_factor:
        out2 = pl.pallas_call(
            _make_const_kernel(factor),
            out_shape=out_shape,
            grid=grid,
            in_specs=[x_spec],
            out_specs=o_spec,
            compiler_params=compiler_params,
            cost_estimate=cost,
        )(x2)
    else:
        # Runtime factor: one 32-bit SMEM scalar read per tile (invisible at
        # HBM-bound throughput), no recompiles per factor value.
        if jnp.issubdtype(factor_arr.dtype, jnp.floating):
            smem_factor = factor_arr.reshape((1,)).astype(jnp.float32)
        elif jnp.issubdtype(factor_arr.dtype, jnp.integer) or factor_arr.dtype == jnp.bool_:
            smem_factor = factor_arr.reshape((1,)).astype(jnp.int32)
        else:
            smem_factor = factor_arr.reshape((1,))
        out2 = pl.pallas_call(
            _smem_factor_kernel,
            out_shape=out_shape,
            grid=grid,
            in_specs=[pl.BlockSpec(memory_space=pltpu.MemorySpace.SMEM), x_spec],
            out_specs=o_spec,
            compiler_params=compiler_params,
            cost_estimate=cost,
        )(smem_factor, x2)

    out_flat = out2.reshape(-1)
    if n_main != n:
        tail = (flat[n_main:] * factor).astype(out_dtype)
        out_flat = jnp.concatenate([out_flat, tail])
    return out_flat.reshape(orig_shape)


if __name__ == "__main__":
    key = jax.random.PRNGKey(0)
    k1, k2, k3 = jax.random.split(key, 3)
    factor = 2.5  # fixed "parameter" from the module's __init__

    # (A) Tiny ACE-style field: small-input bypass path (pure latency win).
    x_a = jax.random.normal(k1, (2, 4, 16, 16), dtype=jnp.float32)
    y_a = jax.block_until_ready(multiply(x_a, factor))
    exp_a = x_a * factor
    assert y_a.shape == x_a.shape and y_a.dtype == exp_a.dtype
    assert jnp.allclose(y_a, exp_a, rtol=1e-6, atol=1e-6)

    # (B) Same field forced through the Pallas kernel (lane-dense slab path).
    y_b = jax.block_until_ready(multiply(x_a, factor, force_pallas=True))
    assert y_b.shape == x_a.shape and y_b.dtype == exp_a.dtype
    assert jnp.allclose(y_b, exp_a, rtol=1e-6, atol=1e-6)

    # (C) bf16 input with a runtime jax-array factor -> SMEM-scalar path,
    #     dtype-aware (16-row) sublane quantum.
    x_c = jax.random.normal(k2, (2, 4, 16, 32), dtype=jnp.bfloat16)
    f_c = jnp.float32(1.75)
    y_c = jax.block_until_ready(multiply(x_c, f_c, force_pallas=True))
    exp_c = x_c * f_c
    assert y_c.shape == x_c.shape and y_c.dtype == exp_c.dtype
    assert jnp.allclose(y_c, exp_c, rtol=1e-6, atol=1e-6)

    # (D) Ragged element count: aligned prefix via Pallas, tiny tail via XLA.
    x_d = jax.random.normal(k3, (2, 3, 11, 13), dtype=jnp.float32)
    y_d = jax.block_until_ready(multiply(x_d, factor, force_pallas=True))
    exp_d = x_d * factor
    assert y_d.shape == x_d.shape and y_d.dtype == exp_d.dtype
    assert jnp.allclose(y_d, exp_d, rtol=1e-6, atol=1e-6)

    print("KERNEL_OK")
</pallas_src>

<mosaic_0001>
module attributes {stable_mosaic.version = 11 : i64} {
  func.func @kernel(%arg0: i32, %arg1: memref<8x256xf32, #tpu.memory_space<vmem>>, %arg2: memref<8x256xf32, #tpu.memory_space<vmem>>) attributes {dimension_semantics = [#tpu.dimension_semantics<parallel>], iteration_bounds = array<i64: 1>, scalar_prefetch = 0 : i64, scratch_operands = 0 : i64, tpu.core_type = #tpu.core_type<tc>, window_params = [{transform_indices = @transform_0, window_bounds = array<i64: 8, 256>}, {transform_indices = @transform_1, window_bounds = array<i64: 8, 256>}]} {
    %c0 = arith.constant 0 : index
    %c0_0 = arith.constant 0 : index
    %0 = vector.load %arg1[%c0, %c0_0] : memref<8x256xf32, #tpu.memory_space<vmem>>, vector<8x256xf32>
    %cst = arith.constant 2.500000e+00 : f32
    %1 = vector.broadcast %cst : f32 to vector<8x256xf32>
    %2 = arith.mulf %0, %1 : vector<8x256xf32>
    %c0_1 = arith.constant 0 : index
    %c0_2 = arith.constant 0 : index
    %3 = vector.load %arg2[%c0_1, %c0_2] : memref<8x256xf32, #tpu.memory_space<vmem>>, vector<8x256xf32>
    tpu.vector_store %arg2[%c0_1, %c0_2], %2 {strides = array<i32>} : memref<8x256xf32, #tpu.memory_space<vmem>>, vector<8x256xf32>,
    return
  }
  func.func @transform_0(%arg0: i32) -> (i32, i32) {
    %c0_i32 = arith.constant 0 : i32
    %c0_i32_0 = arith.constant 0 : i32
    return %arg0, %c0_i32 : i32, i32
  }
  func.func @transform_1(%arg0: i32) -> (i32, i32) {
    %c0_i32 = arith.constant 0 : i32
    %c0_i32_0 = arith.constant 0 : i32
    return %arg0, %c0_i32 : i32, i32
  }
}

</mosaic_0001>

<llo_original>
// kernel: tpu_custom_call.1
$region0: #{tpu_custom_call.1}
  #allocation0 [shape = 'u32[]', space=smem, size = 0x4, offset = 0x4, fixed_abs, tag = 'smem constant byte address 0x4 - core index']
  #allocation1 [shape = 'u32[144,128]{1,0:T(1,128)}', space=vmem, size = 0x12000, scoped, tag = 'internal scratch']
  %s0 = inlined_call_operand.hbm [shape: f32[8,256], index: 0, kind: input, shape index: {}]
  %s1 = inlined_call_operand.hbm [shape: f32[8,256], index: 1, kind: output, shape index: {}]
  %s2 = sld [smem:[#allocation0]]
  $region18: #{tpu_custom_call.1} parent=0
    _
  %s4 = ssub.s32 1, %s2
  %s5 = scalar_select 0, %s4, %s2
  $region1: #{tpu_custom_call.1} parent=0
    #allocation2 [shape = 'u8[8192]{0}', space=vmem, size = 0x2000, scoped, tag = 'input window, operand 0, single buffered']
    #allocation3 [shape = 's32[1]{0}', space=sflag, size = 0x4, scoped, tag = 'scoped memory for tpu_custom_call.1']
    #allocation4 [shape = 's32[1]{0}', space=sflag, size = 0x4, scoped, tag = 'scoped memory for tpu_custom_call.1']
    #allocation5 [shape = 'u8[8192]{0}', space=vmem, size = 0x2000, scoped, tag = 'output window, operand 0, single buffered']
    %6 = vsyncpa [#allocation3], 0
    %7 = vsyncpa [#allocation4], 0
    // Predicated region
    $region2: #{tpu_custom_call.1} parent=1 // pred_check
      _
    $region3: #{tpu_custom_call.1} parent=1 // pred_check_branch
      %9 = sbr.rel (0) target = $region5
    $region4: #{tpu_custom_call.1} parent=1 // pred_region
      %s11 = ssub.s32 256, 256
      %12 = vsyncadd [#allocation3], %s11
      %s14 = sshll.u32 [#allocation2], 4
      %s15 = int_to_ptr.vmem [resolvable:$true] %s14
      %17 = dma.hbm_to_vmem [thread:$0]  %s0, 256, %s15, [#allocation3]
    $region5: #{tpu_custom_call.1} parent=1 // pred_fallthru
      _
    // Predicated region
    $region6: #{tpu_custom_call.1} parent=1 // pred_check
      _
    $region7: #{tpu_custom_call.1} parent=1 // pred_check_branch
      %19 = sbr.rel (0) target = $region9
    $region8: #{tpu_custom_call.1} parent=1 // pred_region
      %20 = dma.done [#allocation3], 256
    $region9: #{tpu_custom_call.1} parent=1 // pred_fallthru
      _
    %v21 = vld [vmem:[#allocation2] sm:$0xff]
    %v22 = vld [vmem:[#allocation2 + $0x8] sm:$0xff]
    %v23 = vmul.f32 %v21, 2.5
    %v24 = vmul.f32 %v22, 2.5
    %25 = vst [vmem:[#allocation5] sm:$0xff] %v23
    %26 = vst [vmem:[#allocation5 + $0x8] sm:$0xff] %v24
    // Predicated region
    $region10: #{tpu_custom_call.1} parent=1 // pred_check
      _
    $region11: #{tpu_custom_call.1} parent=1 // pred_check_branch
      %28 = sbr.rel (0) target = $region13
    $region12: #{tpu_custom_call.1} parent=1 // pred_region
      %s30 = ssub.s32 256, 256
      %31 = vsyncadd [#allocation4], %s30
      %s33 = sshll.u32 [#allocation5], 4
      %s34 = int_to_ptr.vmem [resolvable:$true] %s33
      %36 = dma.vmem_to_hbm [thread:$0]  %s34, 256, %s1, [#allocation4]
    $region13: #{tpu_custom_call.1} parent=1 // pred_fallthru
      _
    // Predicated region
    $region14: #{tpu_custom_call.1} parent=1 // pred_check
      _
    $region15: #{tpu_custom_call.1} parent=1 // pred_check_branch
      %38 = sbr.rel (0) target = $region17
    $region16: #{tpu_custom_call.1} parent=1 // pred_region
      %39 = dma.done [#allocation4], 256
    $region17: #{tpu_custom_call.1} parent=1 // pred_fallthru
      _
    %40 = vsyncpa [#allocation3], 1
    %41 = vsyncpa [#allocation4], 1

</llo_original>
